<compile_context>
chip_gen: v7x
topology: tpu7x:2x2x1
jax: 0.10.0
libtpu: 0.0.40
codegen_flags: <defaults>
</compile_context>

<pallas_src>
import functools

import jax
import jax.numpy as jnp
from jax.experimental import pallas as pl
from jax.experimental.pallas import tpu as pltpu


def _round_up(x: int, m: int) -> int:
    return (x + m - 1) // m * m


def _pick_tile(dim: int, max_tile: int, align: int, max_waste: float = 0.25) -> int:
    """Largest aligned tile <= max_tile whose padding waste stays below max_waste."""
    dim_a = _round_up(max(dim, 1), align)
    t = _round_up(min(max_tile, dim_a), align)
    while t > align and (_round_up(dim, t) - dim) / max(dim, 1) > max_waste:
        t = _round_up(t // 2, align)
    return t


def _scoped_vmem_cap_bytes() -> int:
    # Generation-aware scoped-VMEM cap: at most ~half of physical VMEM and
    # never above 40 MiB, so larger tiles still leave Mosaic headroom on
    # v7x (64 MiB physical) as well as v5e/v6e (128 MiB).
    try:
        phys = pltpu.get_tpu_info().vmem_capacity_bytes
    except Exception:
        phys = 64 << 20
    return int(min(40 << 20, max(8 << 20, phys // 2)))


def _qlayer_linear_kernel(x_ref, w_ref, b_ref, o_ref, acc_ref):
    """One (i, j, k) grid step of y = x @ W^T + b with W pre-transposed to [K, N].

    x_ref:   (tm, tk)  bf16 activation tile
    w_ref:   (tk, tn)  bf16 weight tile (already [K, N] layout)
    b_ref:   (1,  tn)  f32 bias tile
    o_ref:   (tm, tn)  output tile (resident across the K axis)
    acc_ref: (tm, tn)  f32 VMEM accumulator scratch
    """
    k = pl.program_id(2)

    @pl.when(k == 0)
    def _():
        acc_ref[...] = jnp.zeros_like(acc_ref)

    # Plain MN contraction on the MXU, f32 accumulation.
    acc_ref[...] += jnp.dot(
        x_ref[...], w_ref[...], preferred_element_type=jnp.float32
    )

    @pl.when(k == pl.num_programs(2) - 1)
    def _():
        # Bias added exactly once, in f32, in the finalize branch.
        o_ref[...] = (acc_ref[...] + b_ref[...]).astype(o_ref.dtype)


def prepare_qlayer_params(weight, bias, *, tn=None, tk=None,
                          compute_dtype=jnp.bfloat16):
    """One-time weight/bias preparation (hoisted out of the per-forward path).

    weight: [N, K] PyTorch nn.Linear layout, bias: [N].
    Returns (w_kn, b_row, meta) where w_kn is the padded, transposed [K_pad,
    N_pad] compute-dtype weight, b_row is the padded f32 [1, N_pad] bias and
    meta holds the static kwargs for qlayer_forward_prepared.
    """
    N, K = weight.shape
    assert bias.shape == (N,), "bias shape mismatch"

    if tn is None:
        tn = _pick_tile(N, 512, 128)
    if tk is None:
        tk = _pick_tile(K, 1024, 128)

    N_pad = _round_up(N, tn)
    K_pad = _round_up(K, tk)

    w = jnp.asarray(weight, jnp.float32)
    # Pad once, transpose once to [K, N], quantize once to the compute dtype.
    w_kn = jnp.pad(w, ((0, N_pad - N), (0, K_pad - K))).T.astype(compute_dtype)
    b_row = jnp.pad(jnp.asarray(bias, jnp.float32), (0, N_pad - N)).reshape(1, N_pad)

    return w_kn, b_row, dict(n_out=N, tn=tn, tk=tk)


@functools.partial(jax.jit, static_argnames=("n_out", "tn", "tk", "tm"))
def qlayer_forward_prepared(x, w_kn, b_row, *, n_out, tn, tk, tm=None):
    """Wrapped QLayer forward: y = x @ W^T + b, using pre-prepared weights.

    x:     [M, K]        activations (any float dtype; output keeps x.dtype)
    w_kn:  [K_pad, N_pad] prepared weight from prepare_qlayer_params
    b_row: [1, N_pad]     prepared bias
    returns [M, n_out]
    """
    M, K = x.shape
    K_pad, N_pad = w_kn.shape
    assert K <= K_pad and b_row.shape == (1, N_pad)

    out_dtype = x.dtype
    compute_dtype = w_kn.dtype

    if tm is None:
        tm = _pick_tile(M, 512, 8)
    M_pad = _round_up(M, tm)

    # Only the activations are padded per call.  Zero padding along K is
    # benign for the dot product; padded M rows are sliced off at the end.
    x_p = jnp.pad(x, ((0, M_pad - M), (0, K_pad - K))).astype(compute_dtype)

    grid = (M_pad // tm, N_pad // tn, K_pad // tk)

    isz = jnp.dtype(compute_dtype).itemsize
    osz = jnp.dtype(out_dtype).itemsize
    # Double-buffered inputs + output, single f32 accumulator.
    tile_bytes = 2 * (tm * tk * isz + tk * tn * isz + tn * 4 + tm * tn * osz) \
        + tm * tn * 4
    vmem_limit = int(min(max(2 * tile_bytes, 8 << 20), _scoped_vmem_cap_bytes()))

    cost = pl.CostEstimate(
        flops=2 * M_pad * N_pad * K_pad,
        bytes_accessed=M_pad * K_pad * isz + K_pad * N_pad * isz
        + M_pad * N_pad * osz + N_pad * 4,
        transcendentals=0,
    )

    out_p = pl.pallas_call(
        _qlayer_linear_kernel,
        out_shape=jax.ShapeDtypeStruct((M_pad, N_pad), out_dtype),
        grid_spec=pl.GridSpec(
            grid=grid,
            in_specs=[
                pl.BlockSpec((tm, tk), lambda i, j, k: (i, k)),   # x
                pl.BlockSpec((tk, tn), lambda i, j, k: (k, j)),   # weight [K,N]
                pl.BlockSpec((1, tn), lambda i, j, k: (0, j)),    # bias
            ],
            out_specs=pl.BlockSpec((tm, tn), lambda i, j, k: (i, j)),
            scratch_shapes=[pltpu.VMEM((tm, tn), jnp.float32)],
        ),
        compiler_params=pltpu.CompilerParams(
            dimension_semantics=("parallel", "parallel", "arbitrary"),
            vmem_limit_bytes=vmem_limit,
        ),
        cost_estimate=cost,
    )(x_p, w_kn, b_row)

    return out_p[:M, :n_out]


def qlayer_forward(x, weight, bias, **kwargs):
    """Convenience wrapper (prepares weights per call; prefer caching the
    prepared params via prepare_qlayer_params for repeated forwards)."""
    w_kn, b_row, meta = prepare_qlayer_params(weight, bias, **kwargs)
    return qlayer_forward_prepared(x, w_kn, b_row, **meta)


if __name__ == "__main__":
    # Small shapes implied by a wrapped Linear module: batch=2, hidden=32 -> 32.
    batch, in_features, out_features = 2, 32, 32

    key = jax.random.PRNGKey(0)
    kx, kw, kb = jax.random.split(key, 3)
    x = jax.random.normal(kx, (batch, in_features), dtype=jnp.float32)
    weight = jax.random.normal(kw, (out_features, in_features), dtype=jnp.float32) * 0.05
    bias = jax.random.normal(kb, (out_features,), dtype=jnp.float32) * 0.01

    # Weight prep happens once (hoisted out of the per-forward path).
    w_kn, b_row, meta = prepare_qlayer_params(weight, bias)
    out = qlayer_forward_prepared(x, w_kn, b_row, **meta)
    jax.block_until_ready(out)

    # Reference applies the same bf16 operand quantization with f32 accumulation.
    def ref_linear(x_, w_, b_):
        xb = x_.astype(jnp.bfloat16).astype(jnp.float32)
        wb = w_.astype(jnp.bfloat16).astype(jnp.float32)
        return xb @ wb.T + b_

    ref = ref_linear(x, weight, bias)
    assert out.shape == ref.shape, "shape mismatch vs reference"
    assert jnp.allclose(out, ref, atol=1e-4, rtol=1e-4), "mismatch vs reference"

    # Larger, deliberately non-tile-aligned shapes to exercise tiling/padding.
    kx2, kw2, kb2 = jax.random.split(jax.random.PRNGKey(1), 3)
    M2, K2, N2 = 200, 640, 384
    x2 = jax.random.normal(kx2, (M2, K2), dtype=jnp.float32)
    w2 = jax.random.normal(kw2, (N2, K2), dtype=jnp.float32) * 0.02
    b2 = jax.random.normal(kb2, (N2,), dtype=jnp.float32) * 0.01
    w2_kn, b2_row, meta2 = prepare_qlayer_params(w2, b2)
    out2 = qlayer_forward_prepared(x2, w2_kn, b2_row, **meta2)
    jax.block_until_ready(out2)
    ref2 = ref_linear(x2, w2, b2)
    assert out2.shape == ref2.shape, "shape mismatch vs reference (tiled)"
    assert jnp.allclose(out2, ref2, atol=2e-3, rtol=2e-3), "mismatch vs reference (tiled)"

    print("KERNEL_OK")
</pallas_src>

<mosaic_0001>
module attributes {stable_mosaic.version = 11 : i64} {
  func.func @_qlayer_linear_kernel(%arg0: i32, %arg1: i32, %arg2: i32, %arg3: memref<8x128xbf16, #tpu.memory_space<vmem>>, %arg4: memref<128x128xbf16, #tpu.memory_space<vmem>>, %arg5: memref<1x128xf32, #tpu.memory_space<vmem>>, %arg6: memref<8x128xf32, #tpu.memory_space<vmem>>, %arg7: memref<8x128xf32, #tpu.memory_space<vmem>>) attributes {dimension_semantics = [#tpu.dimension_semantics<parallel>, #tpu.dimension_semantics<parallel>, #tpu.dimension_semantics<arbitrary>], iteration_bounds = array<i64: 1, 1, 1>, scalar_prefetch = 0 : i64, scratch_operands = 1 : i64, tpu.core_type = #tpu.core_type<tc>, window_params = [{transform_indices = @transform_0, window_bounds = array<i64: 8, 128>}, {transform_indices = @transform_1, window_bounds = array<i64: 128, 128>}, {transform_indices = @transform_2, window_bounds = array<i64: 1, 128>}, {transform_indices = @transform_3, window_bounds = array<i64: 8, 128>}]} {
    %c0_i32 = arith.constant 0 : i32
    %0 = arith.cmpi eq, %arg2, %c0_i32 : i32
    %1 = arith.extui %0 : i1 to i32
    %c0_i32_0 = arith.constant 0 : i32
    %2 = arith.cmpi ne, %1, %c0_i32_0 : i32
    scf.if %2 {
      %cst_10 = arith.constant 0.000000e+00 : f32
      %12 = vector.broadcast %cst_10 : f32 to vector<8x128xf32>
      %c0_11 = arith.constant 0 : index
      %c0_12 = arith.constant 0 : index
      %13 = vector.load %arg7[%c0_11, %c0_12] : memref<8x128xf32, #tpu.memory_space<vmem>>, vector<8x128xf32>
      tpu.vector_store %arg7[%c0_11, %c0_12], %12 {strides = array<i32>} : memref<8x128xf32, #tpu.memory_space<vmem>>, vector<8x128xf32>,
    } else {
    }
    %c0 = arith.constant 0 : index
    %c0_1 = arith.constant 0 : index
    %3 = vector.load %arg7[%c0, %c0_1] : memref<8x128xf32, #tpu.memory_space<vmem>>, vector<8x128xf32>
    %c0_2 = arith.constant 0 : index
    %c0_3 = arith.constant 0 : index
    %4 = vector.load %arg3[%c0_2, %c0_3] : memref<8x128xbf16, #tpu.memory_space<vmem>>, vector<8x128xbf16>
    %c0_4 = arith.constant 0 : index
    %c0_5 = arith.constant 0 : index
    %5 = vector.load %arg4[%c0_4, %c0_5] : memref<128x128xbf16, #tpu.memory_space<vmem>>, vector<128x128xbf16>
    %cst = arith.constant dense<0.000000e+00> : vector<8x128xf32>
    %6 = tpu.matmul %4, %5, %cst {dimension_numbers = #tpu.dot_dimension_numbers<[1], [0], [0], [1], [0, 0, 1, 1], [], []>} : vector<8x128xbf16>, vector<128x128xbf16>, vector<8x128xf32> -> vector<8x128xf32>
    %7 = arith.addf %3, %6 : vector<8x128xf32>
    %c0_6 = arith.constant 0 : index
    %c0_7 = arith.constant 0 : index
    %8 = vector.load %arg7[%c0_6, %c0_7] : memref<8x128xf32, #tpu.memory_space<vmem>>, vector<8x128xf32>
    tpu.vector_store %arg7[%c0_6, %c0_7], %7 {strides = array<i32>} : memref<8x128xf32, #tpu.memory_space<vmem>>, vector<8x128xf32>,
    %c0_i32_8 = arith.constant 0 : i32
    %9 = arith.cmpi eq, %arg2, %c0_i32_8 : i32
    %10 = arith.extui %9 : i1 to i32
    %c0_i32_9 = arith.constant 0 : i32
    %11 = arith.cmpi ne, %10, %c0_i32_9 : i32
    scf.if %11 {
      %c0_10 = arith.constant 0 : index
      %c0_11 = arith.constant 0 : index
      %12 = vector.load %arg7[%c0_10, %c0_11] : memref<8x128xf32, #tpu.memory_space<vmem>>, vector<8x128xf32>
      %c0_12 = arith.constant 0 : index
      %c0_13 = arith.constant 0 : index
      %13 = vector.load %arg5[%c0_12, %c0_13] : memref<1x128xf32, #tpu.memory_space<vmem>>, vector<1x128xf32>
      %14 = vector.broadcast %13 : vector<1x128xf32> to vector<8x128xf32>
      %15 = arith.addf %12, %14 : vector<8x128xf32>
      %c0_14 = arith.constant 0 : index
      %c0_15 = arith.constant 0 : index
      %16 = vector.load %arg6[%c0_14, %c0_15] : memref<8x128xf32, #tpu.memory_space<vmem>>, vector<8x128xf32>
      tpu.vector_store %arg6[%c0_14, %c0_15], %15 {strides = array<i32>} : memref<8x128xf32, #tpu.memory_space<vmem>>, vector<8x128xf32>,
    } else {
    }
    return
  }
  func.func @transform_0(%arg0: i32, %arg1: i32, %arg2: i32) -> (i32, i32) {
    %c0_i32 = arith.constant 0 : i32
    return %arg0, %arg2 : i32, i32
  }
  func.func @transform_1(%arg0: i32, %arg1: i32, %arg2: i32) -> (i32, i32) {
    %c0_i32 = arith.constant 0 : i32
    return %arg2, %arg1 : i32, i32
  }
  func.func @transform_2(%arg0: i32, %arg1: i32, %arg2: i32) -> (i32, i32) {
    %c0_i32 = arith.constant 0 : i32
    %c0_i32_0 = arith.constant 0 : i32
    return %c0_i32, %arg1 : i32, i32
  }
  func.func @transform_3(%arg0: i32, %arg1: i32, %arg2: i32) -> (i32, i32) {
    %c0_i32 = arith.constant 0 : i32
    return %arg0, %arg1 : i32, i32
  }
}

</mosaic_0001>

<llo_original>
// kernel: qlayer_forward_prepared.1
$region0: #{qlayer_forward_prepared.1}
  #allocation0 [shape = 'u32[]', space=smem, size = 0x4, offset = 0x4, fixed_abs, tag = 'smem constant byte address 0x4 - core index']
  #allocation1 [shape = 'u32[144,128]{1,0:T(1,128)}', space=vmem, size = 0x12000, scoped, tag = 'internal scratch']
  #allocation2 [shape = 'f32[8,128]{1,0:T(8,128)}', space=vmem, size = 0x1000, scoped, tag = 'scratch operand']
  %s0 = inlined_call_operand.vmem [shape: bf16[8,128], index: 0, kind: input, shape index: {}]
  %s1 = inlined_call_operand.hbm [shape: bf16[128,128], index: 1, kind: input, shape index: {}]
  %s2 = inlined_call_operand.vmem [shape: f32[1,128], index: 2, kind: input, shape index: {}]
  %s3 = inlined_call_operand.vmem [shape: f32[8,128], index: 3, kind: output, shape index: {}]
  %s4 = sld [smem:[#allocation0]]
  $region34: #{qlayer_forward_prepared.1} parent=0
    _
  %s6 = ssub.s32 1, %s4
  %s7 = scalar_select 0, %s6, %s4
  $region1: #{qlayer_forward_prepared.1} parent=0
    #allocation3 [shape = 'u8[32768]{0}', space=vmem, size = 0x8000, scoped, tag = 'input window, operand 1, single buffered']
    #allocation4 [shape = 's32[1]{0}', space=sflag, size = 0x4, scoped, tag = 'scoped memory for qlayer_forward_prepared.1']
    %8 = vsyncpa [#allocation4], 0
    // Predicated region
    $region2: #{qlayer_forward_prepared.1} parent=1 // pred_check
      _
    $region3: #{qlayer_forward_prepared.1} parent=1 // pred_check_branch
      %10 = sbr.rel (0) target = $region5
    $region4: #{qlayer_forward_prepared.1} parent=1 // pred_region
      _
    $region5: #{qlayer_forward_prepared.1} parent=1 // pred_fallthru
      _
    // Predicated region
    $region6: #{qlayer_forward_prepared.1} parent=1 // pred_check
      _
    $region7: #{qlayer_forward_prepared.1} parent=1 // pred_check_branch
      %12 = sbr.rel (0) target = $region9
    $region8: #{qlayer_forward_prepared.1} parent=1 // pred_region
      %s14 = ssub.s32 1024, 1024
      %15 = vsyncadd [#allocation4], %s14
      %s16 = sshll.u32 [#allocation3], 4
      %s17 = int_to_ptr.vmem [resolvable:$true] %s16
      %22 = dma.hbm_to_vmem [thread:$0]  %s1, 1024, %s17, [#allocation4], 64, 64, 4
    $region9: #{qlayer_forward_prepared.1} parent=1 // pred_fallthru
      _
    // Predicated region
    $region10: #{qlayer_forward_prepared.1} parent=1 // pred_check
      _
    $region11: #{qlayer_forward_prepared.1} parent=1 // pred_check_branch
      %24 = sbr.rel (0) target = $region13
    $region12: #{qlayer_forward_prepared.1} parent=1 // pred_region
      _
    $region13: #{qlayer_forward_prepared.1} parent=1 // pred_fallthru
      _
    // Predicated region
    $region14: #{qlayer_forward_prepared.1} parent=1 // pred_check
      _
    $region15: #{qlayer_forward_prepared.1} parent=1 // pred_check_branch
      %26 = sbr.rel (0) target = $region17
    $region16: #{qlayer_forward_prepared.1} parent=1 // pred_region
      %27 = dma.done [#allocation4], 1024
    $region17: #{qlayer_forward_prepared.1} parent=1 // pred_fallthru
      _
    %p29 = scmp.eq.s32.totalorder 0, 0
    // Predicated region
    $region18: #{qlayer_forward_prepared.1} parent=1 // pred_check
      %p30 = pneg %p29
    $region19: #{qlayer_forward_prepared.1} parent=1 // pred_check_branch
      %32 = sbr.rel (%p30) target = $region21
    $region20: #{qlayer_forward_prepared.1} parent=1 // pred_region
      %33 = vst [vmem:[#allocation2] sm:$0xff] 0.0
    $region21: #{qlayer_forward_prepared.1} parent=1 // pred_fallthru
      _
    %v34 = vld [vmem:[#allocation2] sm:$0xff]
    %v35 = vld [vmem:[%s0] sm:$0xf]
    %v36 = vld [vmem:[#allocation3] sm:$0xf]
    %v37 = vld [vmem:[#allocation3 + $0x4] sm:$0xf]
    %v38 = vld [vmem:[#allocation3 + $0x8] sm:$0xf]
    %v39 = vld [vmem:[#allocation3 + $0xc] sm:$0xf]
    %v40 = vld [vmem:[#allocation3 + $0x10] sm:$0xf]
    %v41 = vld [vmem:[#allocation3 + $0x14] sm:$0xf]
    %v42 = vld [vmem:[#allocation3 + $0x18] sm:$0xf]
    %v43 = vld [vmem:[#allocation3 + $0x1c] sm:$0xf]
    %v44 = vld [vmem:[#allocation3 + $0x20] sm:$0xf]
    %v45 = vld [vmem:[#allocation3 + $0x24] sm:$0xf]
    %v46 = vld [vmem:[#allocation3 + $0x28] sm:$0xf]
    %v47 = vld [vmem:[#allocation3 + $0x2c] sm:$0xf]
    %v48 = vld [vmem:[#allocation3 + $0x30] sm:$0xf]
    %v49 = vld [vmem:[#allocation3 + $0x34] sm:$0xf]
    %v50 = vld [vmem:[#allocation3 + $0x38] sm:$0xf]
    %v51 = vld [vmem:[#allocation3 + $0x3c] sm:$0xf]
    %v68 = vunpack.c.l.b16 %v36
    %v69 = vunpack.c.l.b16 %v37
    %v70 = vunpack.c.l.b16 %v38
    %v71 = vunpack.c.l.b16 %v39
    %v72 = vunpack.c.l.b16 %v40
    %v73 = vunpack.c.l.b16 %v41
    %v74 = vunpack.c.l.b16 %v42
    %v75 = vunpack.c.l.b16 %v43
    %v76 = vunpack.c.l.b16 %v44
    %v77 = vunpack.c.l.b16 %v45
    %v78 = vunpack.c.l.b16 %v46
    %v79 = vunpack.c.l.b16 %v47
    %v80 = vunpack.c.l.b16 %v48
    %v81 = vunpack.c.l.b16 %v49
    %v82 = vunpack.c.l.b16 %v50
    %v83 = vunpack.c.l.b16 %v51
    %v84 = vpack.c.b16 %v69, %v68
    %v85 = vpack.c.b16 %v71, %v70
    %v86 = vpack.c.b16 %v73, %v72
    %v87 = vpack.c.b16 %v75, %v74
    %v88 = vpack.c.b16 %v77, %v76
    %v89 = vpack.c.b16 %v79, %v78
    %v90 = vpack.c.b16 %v81, %v80
    %v91 = vpack.c.b16 %v83, %v82
    %100 = vmatprep.subr.bf16.mxu0 0
    %101 = vmatpush1.bf16.msra.mxu0 %v84
    %102 = vmatprep.subr.bf16.mxu0 0
    %103 = vmatpush1.bf16.msra.mxu0 %v85
    %104 = vmatprep.subr.bf16.mxu0 0
    %105 = vmatpush1.bf16.msra.mxu0 %v86
    %106 = vmatprep.subr.bf16.mxu0 0
    %107 = vmatpush1.bf16.msra.mxu0 %v87
    %108 = vmatprep.subr.bf16.mxu0 0
    %109 = vmatpush1.bf16.msra.mxu0 %v88
    %110 = vmatprep.subr.bf16.mxu0 0
    %111 = vmatpush1.bf16.msra.mxu0 %v89
    %112 = vmatprep.subr.bf16.mxu0 0
    %113 = vmatpush1.bf16.msra.mxu0 %v90
    %114 = vmatprep.subr.bf16.mxu0 0
    %115 = vmatpush1.bf16.msra.mxu0 %v91
    %116 = vmatprep.subr.bf16.mxu0 0
    %117 = vmatpush1.bf16.msra.mxu0 0
    %118 = vmatprep.subr.bf16.mxu0 0
    %119 = vmatpush1.bf16.msra.mxu0 0
    %120 = vmatprep.subr.bf16.mxu0 0
    %121 = vmatpush1.bf16.msra.mxu0 0
    %122 = vmatprep.subr.bf16.mxu0 0
    %123 = vmatpush1.bf16.msra.mxu0 0
    %124 = vmatprep.subr.bf16.mxu0 0
    %125 = vmatpush1.bf16.msra.mxu0 0
    %126 = vmatprep.subr.bf16.mxu0 0
    %127 = vmatpush1.bf16.msra.mxu0 0
    %128 = vmatprep.subr.bf16.mxu0 0
    %129 = vmatpush1.bf16.msra.mxu0 0
    %130 = vmatprep.subr.bf16.mxu0 0
    %131 = vmatpush1.bf16.msra.mxu0 0
    %132 = vmatprep.mubr.bf16.mxu0 0
    %133 = vmatmul.mubr.bf16.gmra.mrb[0].mxu0 %v35
    %v134 = vpop.f32.mrb[0].mxu0
    %v135 = vadd.f32 0.0, %v134
    %v136 = vpop.f32.mrb[0].mxu0
    %v137 = vpop.f32.mrb[0].mxu0
    %v138 = vpop.f32.mrb[0].mxu0
    %139 = vdwg.mxu0
    %v140 = vadd.f32 %v34, %v135
    %141 = vst [vmem:[#allocation2] sm:$0xff] %v140
    // Predicated region
    $region22: #{qlayer_forward_prepared.1} parent=1 // pred_check
      %p142 = pneg %p29
    $region23: #{qlayer_forward_prepared.1} parent=1 // pred_check_branch
      %144 = sbr.rel (%p142) target = $region25
    $region24: #{qlayer_forward_prepared.1} parent=1 // pred_region
      %v145 = vld [vmem:[#allocation2] sm:$0xff]
      %v146 = vld [vmem:[%s2] sm:$0x1]
      %v148 = vlaneseq
      %v149 = vshrl.u32 %v148, 7
      %v150 = vsub.s32 0, %v149
      %v151 = vrot.slane %v146, %v150
      %v153 = vadd.f32 %v145, %v151
      %154 = vst [vmem:[%s3] sm:$0xff] %v153
    $region25: #{qlayer_forward_prepared.1} parent=1 // pred_fallthru
      _
    // Predicated region
    $region26: #{qlayer_forward_prepared.1} parent=1 // pred_check
      _
    $region27: #{qlayer_forward_prepared.1} parent=1 // pred_check_branch
      %156 = sbr.rel (0) target = $region29
    $region28: #{qlayer_forward_prepared.1} parent=1 // pred_region
      _
    $region29: #{qlayer_forward_prepared.1} parent=1 // pred_fallthru
      _
    // Predicated region
    $region30: #{qlayer_forward_prepared.1} parent=1 // pred_check
      _
    $region31: #{qlayer_forward_prepared.1} parent=1 // pred_check_branch
      %158 = sbr.rel (0) target = $region33
    $region32: #{qlayer_forward_prepared.1} parent=1 // pred_region
      _
    $region33: #{qlayer_forward_prepared.1} parent=1 // pred_fallthru
      _
    %159 = vsyncpa [#allocation4], 1

</llo_original>
